<compile_context>
chip_gen: v5e
topology: v5e:2x2
jax: 0.10.0
libtpu: 0.0.40
codegen_flags: <defaults>
</compile_context>

<pallas_src>
import jax
import jax.numpy as jnp
from jax.experimental import pallas as pl
from jax.experimental.pallas import tpu as pltpu

# --- module hyper-parameters: ConvTranspose2d(4, 8, 3, stride=2, padding=1, output_padding=1)
P_DROP = 0.2
CIN, COUT = 4, 8
K = 3
STRIDE = 2
PAD = 1
OPAD = 1


def _phase_matmul_kernel(p_ref, w_ref, b_ref, o_ref):
    """Single invocation (no grid), all MC samples folded into lanes.

    p_ref: (4*Cin, N*H*W)  f32  4-shift patches of the dropout-masked input
    w_ref: (4*Cout, 4*Cin) f32  phase-blocked ConvTranspose2d weight
    b_ref: (4*Cout, 1)     f32  bias tiled over the 4 output phases
    o_ref: (4*Cout, N*H*W) f32  phase-blocked output (N*256 lanes, dense unmasked stores)
    """
    y = jnp.dot(
        w_ref[...], p_ref[...],
        preferred_element_type=jnp.float32,
        precision=jax.lax.Precision.HIGHEST,
    )
    o_ref[...] = y + b_ref[...]


@jax.jit
def mc_dropout_transpose_conv(x_nchw, weight, bias, keep_mask_nc, *, p=P_DROP):
    """x_nchw: (N, Cin, H, W); weight: (Cin, Cout, KH, KW) (PyTorch ConvTranspose2d layout);
    bias: (Cout,); keep_mask_nc: (N, Cin) 0/1 channel keep mask (one MC-dropout draw per
    batch element).  Returns (N, Cout, OH, OW), matching the PyTorch module's output."""
    N, Cin, H, W = x_nchw.shape
    _, Cout, KH, KW = weight.shape
    OH = (H - 1) * STRIDE - 2 * PAD + KH + OPAD
    OW = (W - 1) * STRIDE - 2 * PAD + KW + OPAD
    assert (KH, KW) == (K, K) and OH == 2 * H and OW == 2 * W
    HW = H * W

    # ---- dropout2d + 4-shift patch build (one fused XLA chain on ~16 KiB of data) ----
    # patches[(dr,dc,ci), n*HW + r*W + c] = mask[n,ci]/(1-p) * x[n, ci, r+dr, c+dc]  (0 past edge)
    scale = keep_mask_nc.astype(jnp.float32) / (1.0 - p)                 # (N, Cin)
    xm = x_nchw.astype(jnp.float32) * scale[:, :, None, None]            # masked, NON-dilated
    xz = jnp.pad(xm, ((0, 0), (0, 0), (0, 1), (0, 1)))                   # zero row/col for r+1, c+1
    shifts = [xz[:, :, dr:dr + H, dc:dc + W]
              for dr in (0, 1) for dc in (0, 1)]                         # each (N, Cin, H, W)
    patches = jnp.stack(shifts, axis=0)                                  # (4, N, Cin, H, W)
    patches = jnp.transpose(patches, (0, 2, 1, 3, 4))                    # (4, Cin, N, H, W)
    patches = patches.reshape(4 * Cin, N * HW)                           # rows=(dr,dc,ci), lanes=(n,r,c)

    # ---- phase-blocked weight: w[(a,b,co), (dr,dc,ci)] = W[ci, co, a+1-2dr, b+1-2dc] ----
    # (gather view of the transposed conv: oh = 2r+a reads x[r+dr] through tap kh = a+1-2dr)
    wt = weight.astype(jnp.float32)
    zero_blk = jnp.zeros((Cout, Cin), jnp.float32)
    rows = []
    for a in (0, 1):
        for b in (0, 1):
            blks = []
            for dr in (0, 1):
                for dc in (0, 1):
                    kh, kw = a + 1 - 2 * dr, b + 1 - 2 * dc
                    if 0 <= kh < KH and 0 <= kw < KW:
                        blks.append(wt[:, :, kh, kw].T)                  # (Cout, Cin)
                    else:
                        blks.append(zero_blk)
            rows.append(jnp.concatenate(blks, axis=1))                   # (Cout, 4*Cin)
    w_phase = jnp.concatenate(rows, axis=0)                              # (4*Cout, 4*Cin) f32
    b_phase = jnp.tile(bias.astype(jnp.float32), 4).reshape(4 * Cout, 1)

    # ---- Pallas call: a single dense matmul over all samples (no grid, whole-array VMEM) ----
    out_phase = pl.pallas_call(
        _phase_matmul_kernel,
        out_shape=jax.ShapeDtypeStruct((4 * Cout, N * HW), jnp.float32),
        in_specs=[
            pl.BlockSpec(memory_space=pltpu.MemorySpace.VMEM),
            pl.BlockSpec(memory_space=pltpu.MemorySpace.VMEM),
            pl.BlockSpec(memory_space=pltpu.MemorySpace.VMEM),
        ],
        out_specs=pl.BlockSpec(memory_space=pltpu.MemorySpace.VMEM),
    )(patches, w_phase, b_phase)

    # ---- phase de-interleave + NCHW return layout (single reshape/transpose) ----
    # TODO(synk): the size-2 phase axes end up innermost in this shuffle; acceptable at this
    # size per the perf review ("or accept it"), revisit only if xprof shows it dominating.
    o = out_phase.reshape(2, 2, Cout, N, H, W)           # [a, b, co, n, r, c]
    o = jnp.transpose(o, (3, 2, 4, 0, 5, 1))             # [n, co, r, a, c, b]
    return o.reshape(N, Cout, OH, OW)                    # oh = 2r+a, ow = 2c+b


if __name__ == "__main__":
    key = jax.random.PRNGKey(0)
    kx, kw, kb, km = jax.random.split(key, 4)

    N, H, W = 2, 16, 16
    x = jax.random.normal(kx, (N, CIN, H, W), jnp.float32)
    # deterministic synthetic parameters (ConvTranspose2d weight layout: (Cin, Cout, KH, KW))
    weight = 0.1 * jax.random.normal(kw, (CIN, COUT, K, K), jnp.float32)
    bias = 0.1 * jax.random.normal(kb, (COUT,), jnp.float32)
    # MC-dropout draw: per-(sample, channel) keep mask, p = 0.2 (training=True always)
    keep = jax.random.bernoulli(km, 1.0 - P_DROP, (N, CIN))

    out = mc_dropout_transpose_conv(x, weight, bias, keep)
    out = jax.block_until_ready(out)

    # pure-JAX f32 reference (same dropout draw) for a correctness check
    xd_ref = x * (keep.astype(jnp.float32) / (1.0 - P_DROP))[:, :, None, None]
    wc = jnp.transpose(jnp.flip(weight, axis=(2, 3)), (1, 0, 2, 3))      # OIHW
    plo, phi = K - 1 - PAD, K - 1 - PAD + OPAD
    ref = jax.lax.conv_general_dilated(
        xd_ref, wc, window_strides=(1, 1),
        padding=((plo, phi), (plo, phi)),
        lhs_dilation=(STRIDE, STRIDE),
        dimension_numbers=("NCHW", "OIHW", "NCHW"),
        precision=jax.lax.Precision.HIGHEST) + bias[None, :, None, None]

    OH = (H - 1) * STRIDE - 2 * PAD + K + OPAD
    assert out.shape == (N, COUT, OH, OH), out.shape
    # f32 operands + HIGHEST precision in-kernel -> tight tolerance vs the f32 reference
    err = float(jnp.max(jnp.abs(out - ref)))
    assert err < 1e-3, err
    print("KERNEL_OK")
</pallas_src>

<mosaic_0001>
module attributes {stable_mosaic.version = 11 : i64} {
  func.func @_phase_matmul_kernel(%arg0: memref<16x512xf32, #tpu.memory_space<vmem>>, %arg1: memref<32x16xf32, #tpu.memory_space<vmem>>, %arg2: memref<32x1xf32, #tpu.memory_space<vmem>>, %arg3: memref<32x512xf32, #tpu.memory_space<vmem>>) attributes {dimension_semantics = [], scalar_prefetch = 0 : i64, scratch_operands = 0 : i64, tpu.core_type = #tpu.core_type<tc>} {
    %c0 = arith.constant 0 : index
    %c0_0 = arith.constant 0 : index
    %0 = vector.load %arg1[%c0, %c0_0] : memref<32x16xf32, #tpu.memory_space<vmem>>, vector<32x16xf32>
    %c0_1 = arith.constant 0 : index
    %c0_2 = arith.constant 0 : index
    %1 = vector.load %arg0[%c0_1, %c0_2] : memref<16x512xf32, #tpu.memory_space<vmem>>, vector<16x512xf32>
    %cst = arith.constant dense<0.000000e+00> : vector<32x512xf32>
    %2 = tpu.matmul %0, %1, %cst {dimension_numbers = #tpu.dot_dimension_numbers<[1], [0], [0], [1], [0, 0, 1, 1], [], []>, precision = #tpu.contract_precision<fp32>} : vector<32x16xf32>, vector<16x512xf32>, vector<32x512xf32> -> vector<32x512xf32>
    %c0_3 = arith.constant 0 : index
    %c0_4 = arith.constant 0 : index
    %3 = vector.load %arg2[%c0_3, %c0_4] : memref<32x1xf32, #tpu.memory_space<vmem>>, vector<32x1xf32>
    %4 = vector.broadcast %3 : vector<32x1xf32> to vector<32x512xf32>
    %5 = arith.addf %2, %4 : vector<32x512xf32>
    %c0_5 = arith.constant 0 : index
    %c0_6 = arith.constant 0 : index
    %6 = vector.load %arg3[%c0_5, %c0_6] : memref<32x512xf32, #tpu.memory_space<vmem>>, vector<32x512xf32>
    tpu.vector_store %arg3[%c0_5, %c0_6], %5 {strides = array<i32>} : memref<32x512xf32, #tpu.memory_space<vmem>>, vector<32x512xf32>,
    return
  }
}

</mosaic_0001>

<llo_original>
// kernel: tile.8
$region0: #{tile.8}
  #allocation0 [shape = 's32[1]{0}', space=sflag, size = 0x4, scoped, tag = 'scoped memory for tile.8']
  %s0 = inlined_call_operand.vmem [shape: f32[8], index: 0, kind: input, shape index: {}]
  %s1 = inlined_call_operand.vmem [shape: f32[4,8], index: 1, kind: output, shape index: {}]
  // Predicated region
  $region2: #{tile.8} parent=0 // pred_check
    _
  $region3: #{tile.8} parent=0 // pred_check_branch
    %3 = sbr.rel (0) target = $region5
  $region4: #{tile.8} parent=0 // pred_region
    _
  $region5: #{tile.8} parent=0 // pred_fallthru
    _
  %v4 = vld [vmem:[%s0] ss:$0 sm:$0xff]
  %5 = vst [vmem:[%s1] sm:$0xf] %v4

// kernel: tile.0
$region0: #{tile.0}
  %s0 = inlined_call_operand.vmem [shape: f32[4,8], index: 0, kind: input, shape index: {}]
  %s1 = inlined_call_operand.vmem [shape: f32[32,1], index: 1, kind: output, shape index: {}]
  $region1: #{tile.0} parent=0
    #allocation0 [shape = 'u8[4096]{0}', space=vmem, size = 0x1000, scoped, tag = 'scoped mem for input reshape']
    %s3 = ssub.s32 16, 1
    %v4 = vld [vmem:[%s0] sm:%s3]
    %5 = vst [vmem:[#allocation0] sm:%s3] %v4
    %v6 = vld [vmem:[#allocation0] sm:$0xf]
    %vm7 = vcmask 7168
    %8 = vst.msk [vmem:[%s1] ss:$8 sm:$0xf] %vm7, %v6
    %v9 = vld [vmem:[#allocation0] sm:$0xf]
    %10 = vrot.lane.b32.xlu0 %v9, 127
    %v11 = vpop.permute.xlu0 %10
    %vm12 = vcmask 7168
    %s13 = scalar_lea.vmem %s1, 1
    %14 = vst.msk [vmem:[%s13] ss:$8 sm:$0xf] %vm12, %v11
    %v15 = vld [vmem:[#allocation0] sm:$0xf]
    %16 = vrot.lane.b32.xlu0 %v15, 126
    %v17 = vpop.permute.xlu0 %16
    %vm18 = vcmask 7168
    %s19 = scalar_lea.vmem %s1, 2
    %20 = vst.msk [vmem:[%s19] ss:$8 sm:$0xf] %vm18, %v17
    %v21 = vld [vmem:[#allocation0] sm:$0xf]
    %22 = vrot.lane.b32.xlu0 %v21, 125
    %v23 = vpop.permute.xlu0 %22
    %vm24 = vcmask 7168
    %s25 = scalar_lea.vmem %s1, 3
    %26 = vst.msk [vmem:[%s25] ss:$8 sm:$0xf] %vm24, %v23
    %v27 = vld [vmem:[#allocation0] sm:$0xf]
    %28 = vrot.lane.b32.xlu0 %v27, 124
    %v29 = vpop.permute.xlu0 %28
    %vm30 = vcmask 7168
    %s31 = scalar_lea.vmem %s1, 4
    %32 = vst.msk [vmem:[%s31] ss:$8 sm:$0xf] %vm30, %v29
    %v33 = vld [vmem:[#allocation0] sm:$0xf]
    %34 = vrot.lane.b32.xlu0 %v33, 123
    %v35 = vpop.permute.xlu0 %34
    %vm36 = vcmask 7168
    %s37 = scalar_lea.vmem %s1, 5
    %38 = vst.msk [vmem:[%s37] ss:$8 sm:$0xf] %vm36, %v35
    %v39 = vld [vmem:[#allocation0] sm:$0xf]
    %40 = vrot.lane.b32.xlu0 %v39, 122
    %v41 = vpop.permute.xlu0 %40
    %vm42 = vcmask 7168
    %s43 = scalar_lea.vmem %s1, 6
    %44 = vst.msk [vmem:[%s43] ss:$8 sm:$0xf] %vm42, %v41
    %v45 = vld [vmem:[#allocation0] sm:$0xf]
    %46 = vrot.lane.b32.xlu0 %v45, 121
    %v47 = vpop.permute.xlu0 %46
    %vm48 = vcmask 7168
    %s49 = scalar_lea.vmem %s1, 7
    %50 = vst.msk [vmem:[%s49] ss:$8 sm:$0xf] %vm48, %v47

// kernel: mc_dropout_transpose_conv.1
$region0: #{mc_dropout_transpose_conv.1}
  #allocation0 [shape = 'u32[]', space=smem, size = 0x4, offset = 0x4, fixed_abs, tag = 'smem constant byte address 0x4 - core index']
  #allocation1 [shape = 'u32[72,128]{1,0:T(1,128)}', space=vmem, size = 0x9000, scoped, tag = 'internal scratch']
  %s0 = inlined_call_operand.vmem [shape: f32[16,512], index: 0, kind: input, shape index: {}]
  %s1 = inlined_call_operand.vmem [shape: f32[32,16], index: 1, kind: input, shape index: {}]
  %s2 = inlined_call_operand.vmem [shape: f32[32,1], index: 2, kind: input, shape index: {}]
  %s3 = inlined_call_operand.vmem [shape: f32[32,512], index: 3, kind: output, shape index: {}]
  %s4 = sld [smem:[#allocation0]]
  $region22: #{mc_dropout_transpose_conv.1} parent=0
    _
  %s6 = ssub.s32 1, %s4
  %s7 = scalar_select 0, %s6, %s4
  // Predicated region
  $region2: #{mc_dropout_transpose_conv.1} parent=0 // pred_check
    _
  $region3: #{mc_dropout_transpose_conv.1} parent=0 // pred_check_branch
    %9 = sbr.rel (0) target = $region5
  $region4: #{mc_dropout_transpose_conv.1} parent=0 // pred_region
    _
  $region5: #{mc_dropout_transpose_conv.1} parent=0 // pred_fallthru
    _
  // Predicated region
  $region6: #{mc_dropout_transpose_conv.1} parent=0 // pred_check
    _
  $region7: #{mc_dropout_transpose_conv.1} parent=0 // pred_check_branch
    %11 = sbr.rel (0) target = $region9
  $region8: #{mc_dropout_transpose_conv.1} parent=0 // pred_region
    _
  $region9: #{mc_dropout_transpose_conv.1} parent=0 // pred_fallthru
    _
  // Predicated region
  $region10: #{mc_dropout_transpose_conv.1} parent=0 // pred_check
    _
  $region11: #{mc_dropout_transpose_conv.1} parent=0 // pred_check_branch
    %13 = sbr.rel (0) target = $region13
  $region12: #{mc_dropout_transpose_conv.1} parent=0 // pred_region
    _
  $region13: #{mc_dropout_transpose_conv.1} parent=0 // pred_fallthru
    _
  %v14 = vld [vmem:[%s1] sm:$0xff]
  %v15 = vld [vmem:[%s1 + $0x8] sm:$0xff]
  %v16 = vld [vmem:[%s1 + $0x10] sm:$0xff]
  %v17 = vld [vmem:[%s1 + $0x18] sm:$0xff]
  %v18 = vld [vmem:[%s0] sm:$0xff]
  %v19 = vld [vmem:[%s0 + $0x8] sm:$0xff]
  %v20 = vld [vmem:[%s0 + $0x10] sm:$0xff]
  %v21 = vld [vmem:[%s0 + $0x18] sm:$0xff]
  %v22 = vld [vmem:[%s0 + $0x20] sm:$0xff]
  %v23 = vld [vmem:[%s0 + $0x28] sm:$0xff]
  %v24 = vld [vmem:[%s0 + $0x30] sm:$0xff]
  %v25 = vld [vmem:[%s0 + $0x38] sm:$0xff]
  %v26 = vld [vmem:[%s2] sm:$0xff]
  %v27 = vld [vmem:[%s2 + $0x8] sm:$0xff]
  %v28 = vld [vmem:[%s2 + $0x10] sm:$0xff]
  %v29 = vld [vmem:[%s2 + $0x18] sm:$0xff]
  %31 = vset.pattern.permute.xlu0 0
  %32 = vperm.xlu0 %31, %v26
  %v33 = vpop.permute.xlu0 %32
  %36 = vset.pattern.permute.xlu0 0
  %37 = vperm.xlu0 %36, %v27
  %v38 = vpop.permute.xlu0 %37
  %41 = vset.pattern.permute.xlu0 0
  %42 = vperm.xlu0 %41, %v28
  %v43 = vpop.permute.xlu0 %42
  %46 = vset.pattern.permute.xlu0 0
  %47 = vperm.xlu0 %46, %v29
  %v48 = vpop.permute.xlu0 %47
  %vm50 = vcmask 130048
  %v52 = vsel %vm50, %v14, 0
  %v55 = vsel %vm50, %v15, 0
  %v58 = vsel %vm50, %v16, 0
  %v61 = vsel %vm50, %v17, 0
  %63 = vmatpush.msra.mxu0 0.0
  %64 = vmatpush.msra.mxu0 0.0
  %65 = vmatpush.msra.mxu0 0.0
  %66 = vmatpush.msra.mxu0 0.0
  %67 = vmatpush.msra.mxu0 0.0
  %68 = vmatpush.msra.mxu0 0.0
  %69 = vmatpush.msra.mxu0 0.0
  %70 = vmatpush.msra.mxu0 0.0
  %71 = vmatpush.msra.mxu0 0.0
  %72 = vmatpush.msra.mxu0 0.0
  %73 = vmatpush.msra.mxu0 0.0
  %74 = vmatpush.msra.mxu0 0.0
  %75 = vmatpush.msra.mxu0 0.0
  %76 = vmatpush.msra.mxu0 0.0
  %v77 = vand.u32 %v22, 4294901760
  %78 = vmatpush.msra.mxu0 %v77
  %v79 = vand.u32 %v18, 4294901760
  %80 = vmatpush.msra.mxu0 %v79
  %v81 = vand.u32 %v52, 4294901760
  %v82 = vsub.f32 %v52, %v81
  %v83 = vand.u32 %v82, 4294901760
  %v84 = vsub.f32 %v82, %v83
  %v85 = vand.u32 %v84, 4294901760
  %86 = vmatmul.f32.gmra.mxu0 %v85
  %v87 = vpop.f32.mrf.mxu0
  %v88 = vadd.f32 %v33, %v87
  %v89 = vand.u32 %v55, 4294901760
  %v90 = vsub.f32 %v55, %v89
  %v91 = vand.u32 %v90, 4294901760
  %v92 = vsub.f32 %v90, %v91
  %v93 = vand.u32 %v92, 4294901760
  %94 = vmatmul.f32.gmra.mxu0 %v93
  %v95 = vpop.f32.mrf.mxu0
  %v96 = vadd.f32 %v38, %v95
  %v97 = vand.u32 %v58, 4294901760
  %v98 = vsub.f32 %v58, %v97
  %v99 = vand.u32 %v98, 4294901760
  %v100 = vsub.f32 %v98, %v99
  %v101 = vand.u32 %v100, 4294901760
  %102 = vmatmul.f32.gmra.mxu0 %v101
  %v103 = vpop.f32.mrf.mxu0
  %v104 = vadd.f32 %v43, %v103
  %v105 = vand.u32 %v61, 4294901760
  %v106 = vsub.f32 %v61, %v105
  %v107 = vand.u32 %v106, 4294901760
  %v108 = vsub.f32 %v106, %v107
  %v109 = vand.u32 %v108, 4294901760
  %110 = vmatmul.f32.gmra.mxu0 %v109
  %v111 = vpop.f32.mrf.mxu0
  %v112 = vadd.f32 %v48, %v111
  %113 = vdwg.mxu0
  %114 = vmatpush.msra.mxu0 0.0
  %115 = vmatpush.msra.mxu0 0.0
  %116 = vmatpush.msra.mxu0 0.0
  %117 = vmatpush.msra.mxu0 0.0
  %118 = vmatpush.msra.mxu0 0.0
  %119 = vmatpush.msra.mxu0 0.0
  %120 = vmatpush.msra.mxu0 0.0
  %121 = vmatpush.msra.mxu0 0.0
  %122 = vmatpush.msra.mxu0 0.0
  %123 = vmatpush.msra.mxu0 0.0
  %124 = vmatpush.msra.mxu0 0.0
  %125 = vmatpush.msra.mxu0 0.0
  %126 = vmatpush.msra.mxu0 0.0
  %127 = vmatpush.msra.mxu0 0.0
  %v128 = vand.u32 %v22, 4294901760
  %v129 = vsub.f32 %v22, %v128
  %v130 = vand.u32 %v129, 4294901760
  %v131 = vsub.f32 %v129, %v130
  %v132 = vand.u32 %v131, 4294901760
  %133 = vmatpush.msra.mxu0 %v132
  %v134 = vand.u32 %v18, 4294901760
  %v135 = vsub.f32 %v18, %v134
  %v136 = vand.u32 %v135, 4294901760
  %v137 = vsub.f32 %v135, %v136
  %v138 = vand.u32 %v137, 4294901760
  %139 = vmatpush.msra.mxu0 %v138
  %v140 = vand.u32 %v52, 4294901760
  %141 = vmatmul.f32.gmra.mxu0 %v140
  %v142 = vpop.f32.mrf.mxu0
  %v143 = vadd.f32 %v88, %v142
  %v144 = vand.u32 %v55, 4294901760
  %145 = vmatmul.f32.gmra.mxu0 %v144
  %v146 = vpop.f32.mrf.mxu0
  %v147 = vadd.f32 %v96, %v146
  %v148 = vand.u32 %v58, 4294901760
  %149 = vmatmul.f32.gmra.mxu0 %v148
  %v150 = vpop.f32.mrf.mxu0
  %v151 = vadd.f32 %v104, %v150
  %v152 = vand.u32 %v61, 4294901760
  %153 = vmatmul.f32.gmra.mxu0 %v152
  %v154 = vpop.f32.mrf.mxu0
  %v155 = vadd.f32 %v112, %v154
  %156 = vdwg.mxu0
  %157 = vmatpush.msra.mxu0 0.0
  %158 = vmatpush.msra.mxu0 0.0
  %159 = vmatpush.msra.mxu0 0.0
  %160 = vmatpush.msra.mxu0 0.0
  %161 = vmatpush.msra.mxu0 0.0
  %162 = vmatpush.msra.mxu0 0.0
  %163 = vmatpush.msra.mxu0 0.0
  %164 = vmatpush.msra.mxu0 0.0
  %165 = vmatpush.msra.mxu0 0.0
  %166 = vmatpush.msra.mxu0 0.0
  %167 = vmatpush.msra.mxu0 0.0
  %168 = vmatpush.msra.mxu0 0.0
  %169 = vmatpush.msra.mxu0 0.0
  %170 = vmatpush.msra.mxu0 0.0
  %v171 = vand.u32 %v22, 4294901760
  %v172 = vsub.f32 %v22, %v171
  %173 = vmatpush.msra.mxu0 %v172
  %v174 = vand.u32 %v18, 4294901760
  %v175 = vsub.f32 %v18, %v174
  %176 = vmatpush.msra.mxu0 %v175
  %v177 = vand.u32 %v52, 4294901760
  %v178 = vsub.f32 %v52, %v177
  %179 = vmatmul.f32.gmra.mxu0 %v178
  %v180 = vpop.f32.mrf.mxu0
  %v181 = vadd.f32 %v143, %v180
  %v182 = vand.u32 %v55, 4294901760
  %v183 = vsub.f32 %v55, %v182
  %184 = vmatmul.f32.gmra.mxu0 %v183
  %v185 = vpop.f32.mrf.mxu0
  %v186 = vadd.f32 %v147, %v185
  %v187 = vand.u32 %v58, 4294901760
  %v188 = vsub.f32 %v58, %v187
  %189 = vmatmul.f32.gmra.mxu0 %v188
  %v190 = vpop.f32.mrf.mxu0
  %v191 = vadd.f32 %v151, %v190
  %v192 = vand.u32 %v61, 4294901760
  %v193 = vsub.f32 %v61, %v192
  %194 = vmatmul.f32.gmra.mxu0 %v193
  %v195 = vpop.f32.mrf.mxu0
  %v196 = vadd.f32 %v155, %v195
  %197 = vdwg.mxu0
  %198 = vmatpush.msra.mxu0 0.0
  %199 = vmatpush.msra.mxu0 0.0
  %200 = vmatpush.msra.mxu0 0.0
  %201 = vmatpush.msra.mxu0 0.0
  %202 = vmatpush.msra.mxu0 0.0
  %203 = vmatpush.msra.mxu0 0.0
  %204 = vmatpush.msra.mxu0 0.0
  %205 = vmatpush.msra.mxu0 0.0
  %206 = vmatpush.msra.mxu0 0.0
  %207 = vmatpush.msra.mxu0 0.0
  %208 = vmatpush.msra.mxu0 0.0
  %209 = vmatpush.msra.mxu0 0.0
  %210 = vmatpush.msra.mxu0 0.0
  %211 = vmatpush.msra.mxu0 0.0
  %v212 = vand.u32 %v22, 4294901760
  %213 = vmatpush.msra.mxu0 %v212
  %v214 = vand.u32 %v18, 4294901760
  %215 = vmatpush.msra.mxu0 %v214
  %v216 = vand.u32 %v52, 4294901760
  %v217 = vsub.f32 %v52, %v216
  %v218 = vand.u32 %v217, 4294901760
  %219 = vmatmul.f32.gmra.mxu0 %v218
  %v220 = vpop.f32.mrf.mxu0
  %v221 = vadd.f32 %v181, %v220
  %v222 = vand.u32 %v55, 4294901760
  %v223 = vsub.f32 %v55, %v222
  %v224 = vand.u32 %v223, 4294901760
  %225 = vmatmul.f32.gmra.mxu0 %v224
  %v226 = vpop.f32.mrf.mxu0
  %v227 = vadd.f32 %v186, %v226
  %v228 = vand.u32 %v58, 4294901760
  %v229 = vsub.f32 %v58, %v228
  %v230 = vand.u32 %v229, 4294901760
  %231 = vmatmul.f32.gmra.mxu0 %v230
  %v232 = vpop.f32.mrf.mxu0
  %v233 = vadd.f32 %v191, %v232
  %v234 = vand.u32 %v61, 4294901760
  %v235 = vsub.f32 %v61, %v234
  %v236 = vand.u32 %v235, 4294901760
  %237 = vmatmul.f32.gmra.mxu0 %v236
  %v238 = vpop.f32.mrf.mxu0
  %v239 = vadd.f32 %v196, %v238
  %240 = vdwg.mxu0
  %241 = vmatpush.msra.mxu0 0.0
  %242 = vmatpush.msra.mxu0 0.0
  %243 = vmatpush.msra.mxu0 0.0
  %244 = vmatpush.msra.mxu0 0.0
  %245 = vmatpush.msra.mxu0 0.0
  %246 = vmatpush.msra.mxu0 0.0
  %247 = vmatpush.msra.mxu0 0.0
  %248 = vmatpush.msra.mxu0 0.0
  %249 = vmatpush.msra.mxu0 0.0
  %250 = vmatpush.msra.mxu0 0.0
  %251 = vmatpush.msra.mxu0 0.0
  %252 = vmatpush.msra.mxu0 0.0
  %253 = vmatpush.msra.mxu0 0.0
  %254 = vmatpush.msra.mxu0 0.0
  %v255 = vand.u32 %v22, 4294901760
  %v256 = vsub.f32 %v22, %v255
  %v257 = vand.u32 %v256, 4294901760
  %258 = vmatpush.msra.mxu0 %v257
  %v259 = vand.u32 %v18, 4294901760
  %v260 = vsub.f32 %v18, %v259
  %v261 = vand.u32 %v260, 4294901760
  %262 = vmatpush.msra.mxu0 %v261
  %v263 = vand.u32 %v52, 4294901760
  %264 = vmatmul.f32.gmra.mxu0 %v263
  %v265 = vpop.f32.mrf.mxu0
  %v266 = vadd.f32 %v221, %v265
  %v267 = vand.u32 %v55, 4294901760
  %268 = vmatmul.f32.gmra.mxu0 %v267
  %v269 = vpop.f32.mrf.mxu0
  %v270 = vadd.f32 %v227, %v269
  %v271 = vand.u32 %v58, 4294901760
  %272 = vmatmul.f32.gmra.mxu0 %v271
  %v273 = vpop.f32.mrf.mxu0
  %v274 = vadd.f32 %v233, %v273
  %v275 = vand.u32 %v61, 4294901760
  %276 = vmatmul.f32.gmra.mxu0 %v275
  %v277 = vpop.f32.mrf.mxu0
  %v278 = vadd.f32 %v239, %v277
  %279 = vdwg.mxu0
  %280 = vmatpush.msra.mxu0 0.0
  %281 = vmatpush.msra.mxu0 0.0
  %282 = vmatpush.msra.mxu0 0.0
  %283 = vmatpush.msra.mxu0 0.0
  %284 = vmatpush.msra.mxu0 0.0
  %285 = vmatpush.msra.mxu0 0.0
  %286 = vmatpush.msra.mxu0 0.0
  %287 = vmatpush.msra.mxu0 0.0
  %288 = vmatpush.msra.mxu0 0.0
  %289 = vmatpush.msra.mxu0 0.0
  %290 = vmatpush.msra.mxu0 0.0
  %291 = vmatpush.msra.mxu0 0.0
  %292 = vmatpush.msra.mxu0 0.0
  %293 = vmatpush.msra.mxu0 0.0
  %v294 = vand.u32 %v22, 4294901760
  %295 = vmatpush.msra.mxu0 %v294
  %v296 = vand.u32 %v18, 4294901760
  %297 = vmatpush.msra.mxu0 %v296
  %v298 = vand.u32 %v52, 4294901760
  %299 = vmatmul.f32.gmra.mxu0 %v298
  %v300 = vpop.f32.mrf.mxu0
  %v301 = vadd.f32 %v266, %v300
  %v302 = vand.u32 %v55, 4294901760
  %303 = vmatmul.f32.gmra.mxu0 %v302
  %v304 = vpop.f32.mrf.mxu0
  %v305 = vadd.f32 %v270, %v304
  %v306 = vand.u32 %v58, 4294901760
  %307 = vmatmul.f32.gmra.mxu0 %v306
  %v308 = vpop.f32.mrf.mxu0
  %v309 = vadd.f32 %v274, %v308
  %v310 = vand.u32 %v61, 4294901760
  %311 = vmatmul.f32.gmra.mxu0 %v310
  %v312 = vpop.f32.mrf.mxu0
  %v313 = vadd.f32 %v278, %v312
  %314 = vdwg.mxu0
  %315 = vmatpush.msra.mxu0 0.0
  %316 = vmatpush.msra.mxu0 0.0
  %317 = vmatpush.msra.mxu0 0.0
  %318 = vmatpush.msra.mxu0 0.0
  %319 = vmatpush.msra.mxu0 0.0
  %320 = vmatpush.msra.mxu0 0.0
  %321 = vmatpush.msra.mxu0 0.0
  %322 = vmatpush.msra.mxu0 0.0
  %323 = vmatpush.msra.mxu0 0.0
  %324 = vmatpush.msra.mxu0 0.0
  %325 = vmatpush.msra.mxu0 0.0
  %326 = vmatpush.msra.mxu0 0.0
  %327 = vmatpush.msra.mxu0 0.0
  %328 = vmatpush.msra.mxu0 0.0
  %v329 = vand.u32 %v23, 4294901760
  %330 = vmatpush.msra.mxu0 %v329
  %v331 = vand.u32 %v19, 4294901760
  %332 = vmatpush.msra.mxu0 %v331
  %v333 = vand.u32 %v52, 4294901760
  %v334 = vsub.f32 %v52, %v333
  %v335 = vand.u32 %v334, 4294901760
  %v336 = vsub.f32 %v334, %v335
  %v337 = vand.u32 %v336, 4294901760
  %338 = vmatmul.f32.gmra.mxu0 %v337
  %v339 = vpop.f32.mrf.mxu0
  %v340 = vadd.f32 %v33, %v339
  %v341 = vand.u32 %v55, 4294901760
  %v342 = vsub.f32 %v55, %v341
  %v343 = vand.u32 %v342, 4294901760
  %v344 = vsub.f32 %v342, %v343
  %v345 = vand.u32 %v344, 4294901760
  %346 = vmatmul.f32.gmra.mxu0 %v345
  %v347 = vpop.f32.mrf.mxu0
  %v348 = vadd.f32 %v38, %v347
  %v349 = vand.u32 %v58, 4294901760
  %v350 = vsub.f32 %v58, %v349
  %v351 = vand.u32 %v350, 4294901760
  %v352 = vsub.f32 %v350, %v351
  %v353 = vand.u32 %v352, 4294901760
  %354 = vmatmul.f32.gmra.mxu0 %v353
  %v355 = vpop.f32.mrf.mxu0
  %v356 = vadd.f32 %v43, %v355
  %v357 = vand.u32 %v61, 4294901760
  %v358 = vsub.f32 %v61, %v357
  %v359 = vand.u32 %v358, 4294901760
  %v360 = vsub.f32 %v358, %v359
  %v361 = vand.u32 %v360, 4294901760
  %362 = vmatmul.f32.gmra.mxu0 %v361
  %v363 = vpop.f32.mrf.mxu0
  %v364 = vadd.f32 %v48, %v363
  %365 = vdwg.mxu0
  %366 = vmatpush.msra.mxu0 0.0
  %367 = vmatpush.msra.mxu0 0.0
  %368 = vmatpush.msra.mxu0 0.0
  %369 = vmatpush.msra.mxu0 0.0
  %370 = vmatpush.msra.mxu0 0.0
  %371 = vmatpush.msra.mxu0 0.0
  %372 = vmatpush.msra.mxu0 0.0
  %373 = vmatpush.msra.mxu0 0.0
  %374 = vmatpush.msra.mxu0 0.0
  %375 = vmatpush.msra.mxu0 0.0
  %376 = vmatpush.msra.mxu0 0.0
  %377 = vmatpush.msra.mxu0 0.0
  %378 = vmatpush.msra.mxu0 0.0
  %379 = vmatpush.msra.mxu0 0.0
  %v380 = vand.u32 %v23, 4294901760
  %v381 = vsub.f32 %v23, %v380
  %v382 = vand.u32 %v381, 4294901760
  %v383 = vsub.f32 %v381, %v382
  %v384 = vand.u32 %v383, 4294901760
  %385 = vmatpush.msra.mxu0 %v384
  %v386 = vand.u32 %v19, 4294901760
  %v387 = vsub.f32 %v19, %v386
  %v388 = vand.u32 %v387, 4294901760
  %v389 = vsub.f32 %v387, %v388
  %v390 = vand.u32 %v389, 4294901760
  %391 = vmatpush.msra.mxu0 %v390
  %v392 = vand.u32 %v52, 4294901760
  %393 = vmatmul.f32.gmra.mxu0 %v392
  %v394 = vpop.f32.mrf.mxu0
  %v395 = vadd.f32 %v340, %v394
  %v396 = vand.u32 %v55, 4294901760
  %397 = vmatmul.f32.gmra.mxu0 %v396
  %v398 = vpop.f32.mrf.mxu0
  %v399 = vadd.f32 %v348, %v398
  %v400 = vand.u32 %v58, 4294901760
  %401 = vmatmul.f32.gmra.mxu0 %v400
  %v402 = vpop.f32.mrf.mxu0
  %v403 = vadd.f32 %v356, %v402
  %v404 = vand.u32 %v61, 4294901760
  %405 = vmatmul.f32.gmra.mxu0 %v404
  %v406 = vpop.f32.mrf.mxu0
  %v407 = vadd.f32 %v364, %v406
  %408 = vdwg.mxu0
  %409 = vmatpush.msra.mxu0 0.0
  %410 = vmatpush.msra.mxu0 0.0
  %411 = vmatpush.msra.mxu0 0.0
  %412 = vmatpush.msra.mxu0 0.0
  %413 = vmatpush.msra.mxu0 0.0
  %414 = vmatpush.msra.mxu0 0.0
  %415 = vmatpush.msra.mxu0 0.0
  %416 = vmatpush.msra.mxu0 0.0
  %417 = vmatpush.msra.mxu0 0.0
  %418 = vmatpush.msra.mxu0 0.0
  %419 = vmatpush.msra.mxu0 0.0
  %420 = vmatpush.msra.mxu0 0.0
  %421 = vmatpush.msra.mxu0 0.0
  %422 = vmatpush.msra.mxu0 0.0
  %v423 = vand.u32 %v23, 4294901760
  %v424 = vsub.f32 %v23, %v423
  %425 = vmatpush.msra.mxu0 %v424
  %v426 = vand.u32 %v19, 4294901760
  %v427 = vsub.f32 %v19, %v426
  %428 = vmatpush.msra.mxu0 %v427
  %v429 = vand.u32 %v52, 4294901760
  %v430 = vsub.f32 %v52, %v429
  %431 = vmatmul.f32.gmra.mxu0 %v430
  %v432 = vpop.f32.mrf.mxu0
  %v433 = vadd.f32 %v395, %v432
  %v434 = vand.u32 %v55, 4294901760
  %v435 = vsub.f32 %v55, %v434
  %436 = vmatmul.f32.gmra.mxu0 %v435
  %v437 = vpop.f32.mrf.mxu0
  %v438 = vadd.f32 %v399, %v437
  %v439 = vand.u32 %v58, 4294901760
  %v440 = vsub.f32 %v58, %v439
  %441 = vmatmul.f32.gmra.mxu0 %v440
  %v442 = vpop.f32.mrf.mxu0
  %v443 = vadd.f32 %v403, %v442
  %v444 = vand.u32 %v61, 4294901760
  %v445 = vsub.f32 %v61, %v444
  %446 = vmatmul.f32.gmra.mxu0 %v445
  %v447 = vpop.f32.mrf.mxu0
  %v448 = vadd.f32 %v407, %v447
  %449 = vdwg.mxu0
  %450 = vmatpush.msra.mxu0 0.0
  %451 = vmatpush.msra.mxu0 0.0
  %452 = vmatpush.msra.mxu0 0.0
  %453 = vmatpush.msra.mxu0 0.0
  %454 = vmatpush.msra.mxu0 0.0
  %455 = vmatpush.msra.mxu0 0.0
  %456 = vmatpush.msra.mxu0 0.0
  %457 = vmatpush.msra.mxu0 0.0
  %458 = vmatpush.msra.mxu0 0.0
  %459 = vmatpush.msra.mxu0 0.0
  %460 = vmatpush.msra.mxu0 0.0
  %461 = vmatpush.msra.mxu0 0.0
  %462 = vmatpush.msra.mxu0 0.0
  %463 = vmatpush.msra.mxu0 0.0
  %v464 = vand.u32 %v23, 4294901760
  %465 = vmatpush.msra.mxu0 %v464
  %v466 = vand.u32 %v19, 4294901760
  %467 = vmatpush.msra.mxu0 %v466
  %v468 = vand.u32 %v52, 4294901760
  %v469 = vsub.f32 %v52, %v468
  %v470 = vand.u32 %v469, 4294901760
  %471 = vmatmul.f32.gmra.mxu0 %v470
  %v472 = vpop.f32.mrf.mxu0
  %v473 = vadd.f32 %v433, %v472
  %v474 = vand.u32 %v55, 4294901760
  %v475 = vsub.f32 %v55, %v474
  %v476 = vand.u32 %v475, 4294901760
  %477 = vmatmul.f32.gmra.mxu0 %v476
  %v478 = vpop.f32.mrf.mxu0
  %v479 = vadd.f32 %v438, %v478
  %v480 = vand.u32 %v58, 4294901760
  %v481 = vsub.f32 %v58, %v480
  %v482 = vand.u32 %v481, 4294901760
  %483 = vmatmul.f32.gmra.mxu0 %v482
  %v484 = vpop.f32.mrf.mxu0
  %v485 = vadd.f32 %v443, %v484
  %v486 = vand.u32 %v61, 4294901760
  %v487 = vsub.f32 %v61, %v486
  %v488 = vand.u32 %v487, 4294901760
  %489 = vmatmul.f32.gmra.mxu0 %v488
  %v490 = vpop.f32.mrf.mxu0
  %v491 = vadd.f32 %v448, %v490
  %492 = vdwg.mxu0
  %493 = vmatpush.msra.mxu0 0.0
  %494 = vmatpush.msra.mxu0 0.0
  %495 = vmatpush.msra.mxu0 0.0
  %496 = vmatpush.msra.mxu0 0.0
  %497 = vmatpush.msra.mxu0 0.0
  %498 = vmatpush.msra.mxu0 0.0
  %499 = vmatpush.msra.mxu0 0.0
  %500 = vmatpush.msra.mxu0 0.0
  %501 = vmatpush.msra.mxu0 0.0
  %502 = vmatpush.msra.mxu0 0.0
  %503 = vmatpush.msra.mxu0 0.0
  %504 = vmatpush.msra.mxu0 0.0
  %505 = vmatpush.msra.mxu0 0.0
  %506 = vmatpush.msra.mxu0 0.0
  %v507 = vand.u32 %v23, 4294901760
  %v508 = vsub.f32 %v23, %v507
  %v509 = vand.u32 %v508, 4294901760
  %510 = vmatpush.msra.mxu0 %v509
  %v511 = vand.u32 %v19, 4294901760
  %v512 = vsub.f32 %v19, %v511
  %v513 = vand.u32 %v512, 4294901760
  %514 = vmatpush.msra.mxu0 %v513
  %v515 = vand.u32 %v52, 4294901760
  %516 = vmatmul.f32.gmra.mxu0 %v515
  %v517 = vpop.f32.mrf.mxu0
  %v518 = vadd.f32 %v473, %v517
  %v519 = vand.u32 %v55, 4294901760
  %520 = vmatmul.f32.gmra.mxu0 %v519
  %v521 = vpop.f32.mrf.mxu0
  %v522 = vadd.f32 %v479, %v521
  %v523 = vand.u32 %v58, 4294901760
  %524 = vmatmul.f32.gmra.mxu0 %v523
  %v525 = vpop.f32.mrf.mxu0
  %v526 = vadd.f32 %v485, %v525
  %v527 = vand.u32 %v61, 4294901760
  %528 = vmatmul.f32.gmra.mxu0 %v527
  %v529 = vpop.f32.mrf.mxu0
  %v530 = vadd.f32 %v491, %v529
  %531 = vdwg.mxu0
  %532 = vmatpush.msra.mxu0 0.0
  %533 = vmatpush.msra.mxu0 0.0
  %534 = vmatpush.msra.mxu0 0.0
  %535 = vmatpush.msra.mxu0 0.0
  %536 = vmatpush.msra.mxu0 0.0
  %537 = vmatpush.msra.mxu0 0.0
  %538 = vmatpush.msra.mxu0 0.0
  %539 = vmatpush.msra.mxu0 0.0
  %540 = vmatpush.msra.mxu0 0.0
  %541 = vmatpush.msra.mxu0 0.0
  %542 = vmatpush.msra.mxu0 0.0
  %543 = vmatpush.msra.mxu0 0.0
  %544 = vmatpush.msra.mxu0 0.0
  %545 = vmatpush.msra.mxu0 0.0
  %v546 = vand.u32 %v23, 4294901760
  %547 = vmatpush.msra.mxu0 %v546
  %v548 = vand.u32 %v19, 4294901760
  %549 = vmatpush.msra.mxu0 %v548
  %v550 = vand.u32 %v52, 4294901760
  %551 = vmatmul.f32.gmra.mxu0 %v550
  %v552 = vpop.f32.mrf.mxu0
  %v553 = vadd.f32 %v518, %v552
  %v554 = vand.u32 %v55, 4294901760
  %555 = vmatmul.f32.gmra.mxu0 %v554
  %v556 = vpop.f32.mrf.mxu0
  %v557 = vadd.f32 %v522, %v556
  %v558 = vand.u32 %v58, 4294901760
  %559 = vmatmul.f32.gmra.mxu0 %v558
  %v560 = vpop.f32.mrf.mxu0
  %v561 = vadd.f32 %v526, %v560
  %v562 = vand.u32 %v61, 4294901760
  %563 = vmatmul.f32.gmra.mxu0 %v562
  %v564 = vpop.f32.mrf.mxu0
  %v565 = vadd.f32 %v530, %v564
  %566 = vdwg.mxu0
  %567 = vmatpush.msra.mxu0 0.0
  %568 = vmatpush.msra.mxu0 0.0
  %569 = vmatpush.msra.mxu0 0.0
  %570 = vmatpush.msra.mxu0 0.0
  %571 = vmatpush.msra.mxu0 0.0
  %572 = vmatpush.msra.mxu0 0.0
  %573 = vmatpush.msra.mxu0 0.0
  %574 = vmatpush.msra.mxu0 0.0
  %575 = vmatpush.msra.mxu0 0.0
  %576 = vmatpush.msra.mxu0 0.0
  %577 = vmatpush.msra.mxu0 0.0
  %578 = vmatpush.msra.mxu0 0.0
  %579 = vmatpush.msra.mxu0 0.0
  %580 = vmatpush.msra.mxu0 0.0
  %v581 = vand.u32 %v24, 4294901760
  %582 = vmatpush.msra.mxu0 %v581
  %v583 = vand.u32 %v20, 4294901760
  %584 = vmatpush.msra.mxu0 %v583
  %v585 = vand.u32 %v52, 4294901760
  %v586 = vsub.f32 %v52, %v585
  %v587 = vand.u32 %v586, 4294901760
  %v588 = vsub.f32 %v586, %v587
  %v589 = vand.u32 %v588, 4294901760
  %590 = vmatmul.f32.gmra.mxu0 %v589
  %v591 = vpop.f32.mrf.mxu0
  %v592 = vadd.f32 %v33, %v591
  %v593 = vand.u32 %v55, 4294901760
  %v594 = vsub.f32 %v55, %v593
  %v595 = vand.u32 %v594, 4294901760
  %v596 = vsub.f32 %v594, %v595
  %v597 = vand.u32 %v596, 4294901760
  %598 = vmatmul.f32.gmra.mxu0 %v597
  %v599 = vpop.f32.mrf.mxu0
  %v600 = vadd.f32 %v38, %v599
  %v601 = vand.u32 %v58, 4294901760
  %v602 = vsub.f32 %v58, %v601
  %v603 = vand.u32 %v602, 4294901760
  %v604 = vsub.f32 %v602, %v603
  %v605 = vand.u32 %v604, 4294901760
  %606 = vmatmul.f32.gmra.mxu0 %v605
  %v607 = vpop.f32.mrf.mxu0
  %v608 = vadd.f32 %v43, %v607
  %v609 = vand.u32 %v61, 4294901760
  %v610 = vsub.f32 %v61, %v609
  %v611 = vand.u32 %v610, 4294901760
  %v612 = vsub.f32 %v610, %v611
  %v613 = vand.u32 %v612, 4294901760
  %614 = vmatmul.f32.gmra.mxu0 %v613
  %v615 = vpop.f32.mrf.mxu0
  %v616 = vadd.f32 %v48, %v615
  %617 = vdwg.mxu0
  %618 = vmatpush.msra.mxu0 0.0
  %619 = vmatpush.msra.mxu0 0.0
  %620 = vmatpush.msra.mxu0 0.0
  %621 = vmatpush.msra.mxu0 0.0
  %622 = vmatpush.msra.mxu0 0.0
  %623 = vmatpush.msra.mxu0 0.0
  %624 = vmatpush.msra.mxu0 0.0
  %625 = vmatpush.msra.mxu0 0.0
  %626 = vmatpush.msra.mxu0 0.0
  %627 = vmatpush.msra.mxu0 0.0
  %628 = vmatpush.msra.mxu0 0.0
  %629 = vmatpush.msra.mxu0 0.0
  %630 = vmatpush.msra.mxu0 0.0
  %631 = vmatpush.msra.mxu0 0.0
  %v632 = vand.u32 %v24, 4294901760
  %v633 = vsub.f32 %v24, %v632
  %v634 = vand.u32 %v633, 4294901760
  %v635 = vsub.f32 %v633, %v634
  %v636 = vand.u32 %v635, 4294901760
  %637 = vmatpush.msra.mxu0 %v636
  %v638 = vand.u32 %v20, 4294901760
  %v639 = vsub.f32 %v20, %v638
  %v640 = vand.u32 %v639, 4294901760
  %v641 = vsub.f32 %v639, %v640
  %v642 = vand.u32 %v641, 4294901760
  %643 = vmatpush.msra.mxu0 %v642
  %v644 = vand.u32 %v52, 4294901760
  %645 = vmatmul.f32.gmra.mxu0 %v644
  %v646 = vpop.f32.mrf.mxu0
  %v647 = vadd.f32 %v592, %v646
  %v648 = vand.u32 %v55, 4294901760
  %649 = vmatmul.f32.gmra.mxu0 %v648
  %v650 = vpop.f32.mrf.mxu0
  %v651 = vadd.f32 %v600, %v650
  %v652 = vand.u32 %v58, 4294901760
  %653 = vmatmul.f32.gmra.mxu0 %v652
  %v654 = vpop.f32.mrf.mxu0
  %v655 = vadd.f32 %v608, %v654
  %v656 = vand.u32 %v61, 4294901760
  %657 = vmatmul.f32.gmra.mxu0 %v656
  %v658 = vpop.f32.mrf.mxu0
  %v659 = vadd.f32 %v616, %v658
  %660 = vdwg.mxu0
  %661 = vmatpush.msra.mxu0 0.0
  %662 = vmatpush.msra.mxu0 0.0
  %663 = vmatpush.msra.mxu0 0.0
  %664 = vmatpush.msra.mxu0 0.0
  %665 = vmatpush.msra.mxu0 0.0
  %666 = vmatpush.msra.mxu0 0.0
  %667 = vmatpush.msra.mxu0 0.0
  %668 = vmatpush.msra.mxu0 0.0
  %669 = vmatpush.msra.mxu0 0.0
  %670 = vmatpush.msra.mxu0 0.0
  %671 = vmatpush.msra.mxu0 0.0
  %672 = vmatpush.msra.mxu0 0.0
  %673 = vmatpush.msra.mxu0 0.0
  %674 = vmatpush.msra.mxu0 0.0
  %v675 = vand.u32 %v24, 4294901760
  %v676 = vsub.f32 %v24, %v675
  %677 = vmatpush.msra.mxu0 %v676
  %v678 = vand.u32 %v20, 4294901760
  %v679 = vsub.f32 %v20, %v678
  %680 = vmatpush.msra.mxu0 %v679
  %v681 = vand.u32 %v52, 4294901760
  %v682 = vsub.f32 %v52, %v681
  %683 = vmatmul.f32.gmra.mxu0 %v682
  %v684 = vpop.f32.mrf.mxu0
  %v685 = vadd.f32 %v647, %v684
  %v686 = vand.u32 %v55, 4294901760
  %v687 = vsub.f32 %v55, %v686
  %688 = vmatmul.f32.gmra.mxu0 %v687
  %v689 = vpop.f32.mrf.mxu0
  %v690 = vadd.f32 %v651, %v689
  %v691 = vand.u32 %v58, 4294901760
  %v692 = vsub.f32 %v58, %v691
  %693 = vmatmul.f32.gmra.mxu0 %v692
  %v694 = vpop.f32.mrf.mxu0
  %v695 = vadd.f32 %v655, %v694
  %v696 = vand.u32 %v61, 4294901760
  %v697 = vsub.f32 %v61, %v696
  %698 = vmatmul.f32.gmra.mxu0 %v697
  %v699 = vpop.f32.mrf.mxu0
  %v700 = vadd.f32 %v659, %v699
  %701 = vdwg.mxu0
  %702 = vmatpush.msra.mxu0 0.0
  %703 = vmatpush.msra.mxu0 0.0
  %704 = vmatpush.msra.mxu0 0.0
  %705 = vmatpush.msra.mxu0 0.0
  %706 = vmatpush.msra.mxu0 0.0
  %707 = vmatpush.msra.mxu0 0.0
  %708 = vmatpush.msra.mxu0 0.0
  %709 = vmatpush.msra.mxu0 0.0
  %710 = vmatpush.msra.mxu0 0.0
  %711 = vmatpush.msra.mxu0 0.0
  %712 = vmatpush.msra.mxu0 0.0
  %713 = vmatpush.msra.mxu0 0.0
  %714 = vmatpush.msra.mxu0 0.0
  %715 = vmatpush.msra.mxu0 0.0
  %v716 = vand.u32 %v24, 4294901760
  %717 = vmatpush.msra.mxu0 %v716
  %v718 = vand.u32 %v20, 4294901760
  %719 = vmatpush.msra.mxu0 %v718
  %v720 = vand.u32 %v52, 4294901760
  %v721 = vsub.f32 %v52, %v720
  %v722 = vand.u32 %v721, 4294901760
  %723 = vmatmul.f32.gmra.mxu0 %v722
  %v724 = vpop.f32.mrf.mxu0
  %v725 = vadd.f32 %v685, %v724
  %v726 = vand.u32 %v55, 4294901760
  %v727 = vsub.f32 %v55, %v726
  %v728 = vand.u32 %v727, 4294901760
  %729 = vmatmul.f32.gmra.mxu0 %v728
  %v730 = vpop.f32.mrf.mxu0
  %v731 = vadd.f32 %v690, %v730
  %v732 = vand.u32 %v58, 4294901760
  %v733 = vsub.f32 %v58, %v732
  %v734 = vand.u32 %v733, 4294901760
  %735 = vmatmul.f32.gmra.mxu0 %v734
  %v736 = vpop.f32.mrf.mxu0
  %v737 = vadd.f32 %v695, %v736
  %v738 = vand.u32 %v61, 4294901760
  %v739 = vsub.f32 %v61, %v738
  %v740 = vand.u32 %v739, 4294901760
  %741 = vmatmul.f32.gmra.mxu0 %v740
  %v742 = vpop.f32.mrf.mxu0
  %v743 = vadd.f32 %v700, %v742
  %744 = vdwg.mxu0
  %745 = vmatpush.msra.mxu0 0.0
  %746 = vmatpush.msra.mxu0 0.0
  %747 = vmatpush.msra.mxu0 0.0
  %748 = vmatpush.msra.mxu0 0.0
  %749 = vmatpush.msra.mxu0 0.0
  %750 = vmatpush.msra.mxu0 0.0
  %751 = vmatpush.msra.mxu0 0.0
  %752 = vmatpush.msra.mxu0 0.0
  %753 = vmatpush.msra.mxu0 0.0
  %754 = vmatpush.msra.mxu0 0.0
  %755 = vmatpush.msra.mxu0 0.0
  %756 = vmatpush.msra.mxu0 0.0
  %757 = vmatpush.msra.mxu0 0.0
  %758 = vmatpush.msra.mxu0 0.0
  %v759 = vand.u32 %v24, 4294901760
  %v760 = vsub.f32 %v24, %v759
  %v761 = vand.u32 %v760, 4294901760
  %762 = vmatpush.msra.mxu0 %v761
  %v763 = vand.u32 %v20, 4294901760
  %v764 = vsub.f32 %v20, %v763
  %v765 = vand.u32 %v764, 4294901760
  %766 = vmatpush.msra.mxu0 %v765
  %v767 = vand.u32 %v52, 4294901760
  %768 = vmatmul.f32.gmra.mxu0 %v767
  %v769 = vpop.f32.mrf.mxu0
  %v770 = vadd.f32 %v725, %v769
  %v771 = vand.u32 %v55, 4294901760
  %772 = vmatmul.f32.gmra.mxu0 %v771
  %v773 = vpop.f32.mrf.mxu0
  %v774 = vadd.f32 %v731, %v773
  %v775 = vand.u32 %v58, 4294901760
  %776 = vmatmul.f32.gmra.mxu0 %v775
  %v777 = vpop.f32.mrf.mxu0
  %v778 = vadd.f32 %v737, %v777
  %v779 = vand.u32 %v61, 4294901760
  %780 = vmatmul.f32.gmra.mxu0 %v779
  %v781 = vpop.f32.mrf.mxu0
  %v782 = vadd.f32 %v743, %v781
  %783 = vdwg.mxu0
  %784 = vmatpush.msra.mxu0 0.0
  %785 = vmatpush.msra.mxu0 0.0
  %786 = vmatpush.msra.mxu0 0.0
  %787 = vmatpush.msra.mxu0 0.0
  %788 = vmatpush.msra.mxu0 0.0
  %789 = vmatpush.msra.mxu0 0.0
  %790 = vmatpush.msra.mxu0 0.0
  %791 = vmatpush.msra.mxu0 0.0
  %792 = vmatpush.msra.mxu0 0.0
  %793 = vmatpush.msra.mxu0 0.0
  %794 = vmatpush.msra.mxu0 0.0
  %795 = vmatpush.msra.mxu0 0.0
  %796 = vmatpush.msra.mxu0 0.0
  %797 = vmatpush.msra.mxu0 0.0
  %v798 = vand.u32 %v24, 4294901760
  %799 = vmatpush.msra.mxu0 %v798
  %v800 = vand.u32 %v20, 4294901760
  %801 = vmatpush.msra.mxu0 %v800
  %v802 = vand.u32 %v52, 4294901760
  %803 = vmatmul.f32.gmra.mxu0 %v802
  %v804 = vpop.f32.mrf.mxu0
  %v805 = vadd.f32 %v770, %v804
  %v806 = vand.u32 %v55, 4294901760
  %807 = vmatmul.f32.gmra.mxu0 %v806
  %v808 = vpop.f32.mrf.mxu0
  %v809 = vadd.f32 %v774, %v808
  %v810 = vand.u32 %v58, 4294901760
  %811 = vmatmul.f32.gmra.mxu0 %v810
  %v812 = vpop.f32.mrf.mxu0
  %v813 = vadd.f32 %v778, %v812
  %v814 = vand.u32 %v61, 4294901760
  %815 = vmatmul.f32.gmra.mxu0 %v814
  %v816 = vpop.f32.mrf.mxu0
  %v817 = vadd.f32 %v782, %v816
  %818 = vdwg.mxu0
  %819 = vmatpush.msra.mxu0 0.0
  %820 = vmatpush.msra.mxu0 0.0
  %821 = vmatpush.msra.mxu0 0.0
  %822 = vmatpush.msra.mxu0 0.0
  %823 = vmatpush.msra.mxu0 0.0
  %824 = vmatpush.msra.mxu0 0.0
  %825 = vmatpush.msra.mxu0 0.0
  %826 = vmatpush.msra.mxu0 0.0
  %827 = vmatpush.msra.mxu0 0.0
  %828 = vmatpush.msra.mxu0 0.0
  %829 = vmatpush.msra.mxu0 0.0
  %830 = vmatpush.msra.mxu0 0.0
  %831 = vmatpush.msra.mxu0 0.0
  %832 = vmatpush.msra.mxu0 0.0
  %v833 = vand.u32 %v25, 4294901760
  %834 = vmatpush.msra.mxu0 %v833
  %v835 = vand.u32 %v21, 4294901760
  %836 = vmatpush.msra.mxu0 %v835
  %v837 = vand.u32 %v52, 4294901760
  %v838 = vsub.f32 %v52, %v837
  %v839 = vand.u32 %v838, 4294901760
  %v840 = vsub.f32 %v838, %v839
  %v841 = vand.u32 %v840, 4294901760
  %842 = vmatmul.f32.gmra.mxu0 %v841
  %v843 = vpop.f32.mrf.mxu0
  %v844 = vadd.f32 %v33, %v843
  %v845 = vand.u32 %v55, 4294901760
  %v846 = vsub.f32 %v55, %v845
  %v847 = vand.u32 %v846, 4294901760
  %v848 = vsub.f32 %v846, %v847
  %v849 = vand.u32 %v848, 4294901760
  %850 = vmatmul.f32.gmra.mxu0 %v849
  %v851 = vpop.f32.mrf.mxu0
  %v852 = vadd.f32 %v38, %v851
  %v853 = vand.u32 %v58, 4294901760
  %v854 = vsub.f32 %v58, %v853
  %v855 = vand.u32 %v854, 4294901760
  %v856 = vsub.f32 %v854, %v855
  %v857 = vand.u32 %v856, 4294901760
  %858 = vmatmul.f32.gmra.mxu0 %v857
  %v859 = vpop.f32.mrf.mxu0
  %v860 = vadd.f32 %v43, %v859
  %v861 = vand.u32 %v61, 4294901760
  %v862 = vsub.f32 %v61, %v861
  %v863 = vand.u32 %v862, 4294901760
  %v864 = vsub.f32 %v862, %v863
  %v865 = vand.u32 %v864, 4294901760
  %866 = vmatmul.f32.gmra.mxu0 %v865
  %v867 = vpop.f32.mrf.mxu0
  %v868 = vadd.f32 %v48, %v867
  %869 = vdwg.mxu0
  %870 = vmatpush.msra.mxu0 0.0
  %871 = vmatpush.msra.mxu0 0.0
  %872 = vmatpush.msra.mxu0 0.0
  %873 = vmatpush.msra.mxu0 0.0
  %874 = vmatpush.msra.mxu0 0.0
  %875 = vmatpush.msra.mxu0 0.0
  %876 = vmatpush.msra.mxu0 0.0
  %877 = vmatpush.msra.mxu0 0.0
  %878 = vmatpush.msra.mxu0 0.0
  %879 = vmatpush.msra.mxu0 0.0
  %880 = vmatpush.msra.mxu0 0.0
  %881 = vmatpush.msra.mxu0 0.0
  %882 = vmatpush.msra.mxu0 0.0
  %883 = vmatpush.msra.mxu0 0.0
  %v884 = vand.u32 %v25, 4294901760
  %v885 = vsub.f32 %v25, %v884
  %v886 = vand.u32 %v885, 4294901760
  %v887 = vsub.f32 %v885, %v886
  %v888 = vand.u32 %v887, 4294901760
  %889 = vmatpush.msra.mxu0 %v888
  %v890 = vand.u32 %v21, 4294901760
  %v891 = vsub.f32 %v21, %v890
  %v892 = vand.u32 %v891, 4294901760
  %v893 = vsub.f32 %v891, %v892
  %v894 = vand.u32 %v893, 4294901760
  %895 = vmatpush.msra.mxu0 %v894
  %v896 = vand.u32 %v52, 4294901760
  %897 = vmatmul.f32.gmra.mxu0 %v896
  %v898 = vpop.f32.mrf.mxu0
  %v899 = vadd.f32 %v844, %v898
  %v900 = vand.u32 %v55, 4294901760
  %901 = vmatmul.f32.gmra.mxu0 %v900
  %v902 = vpop.f32.mrf.mxu0
  %v903 = vadd.f32 %v852, %v902
  %v904 = vand.u32 %v58, 4294901760
  %905 = vmatmul.f32.gmra.mxu0 %v904
  %v906 = vpop.f32.mrf.mxu0
  %v907 = vadd.f32 %v860, %v906
  %v908 = vand.u32 %v61, 4294901760
  %909 = vmatmul.f32.gmra.mxu0 %v908
  %v910 = vpop.f32.mrf.mxu0
  %v911 = vadd.f32 %v868, %v910
  %912 = vdwg.mxu0
  %913 = vmatpush.msra.mxu0 0.0
  %914 = vmatpush.msra.mxu0 0.0
  %915 = vmatpush.msra.mxu0 0.0
  %916 = vmatpush.msra.mxu0 0.0
  %917 = vmatpush.msra.mxu0 0.0
  %918 = vmatpush.msra.mxu0 0.0
  %919 = vmatpush.msra.mxu0 0.0
  %920 = vmatpush.msra.mxu0 0.0
  %921 = vmatpush.msra.mxu0 0.0
  %922 = vmatpush.msra.mxu0 0.0
  %923 = vmatpush.msra.mxu0 0.0
  %924 = vmatpush.msra.mxu0 0.0
  %925 = vmatpush.msra.mxu0 0.0
  %926 = vmatpush.msra.mxu0 0.0
  %v927 = vand.u32 %v25, 4294901760
  %v928 = vsub.f32 %v25, %v927
  %929 = vmatpush.msra.mxu0 %v928
  %v930 = vand.u32 %v21, 4294901760
  %v931 = vsub.f32 %v21, %v930
  %932 = vmatpush.msra.mxu0 %v931
  %v933 = vand.u32 %v52, 4294901760
  %v934 = vsub.f32 %v52, %v933
  %935 = vmatmul.f32.gmra.mxu0 %v934
  %v936 = vpop.f32.mrf.mxu0
  %v937 = vadd.f32 %v899, %v936
  %v938 = vand.u32 %v55, 4294901760
  %v939 = vsub.f32 %v55, %v938
  %940 = vmatmul.f32.gmra.mxu0 %v939
  %v941 = vpop.f32.mrf.mxu0
  %v942 = vadd.f32 %v903, %v941
  %v943 = vand.u32 %v58, 4294901760
  %v944 = vsub.f32 %v58, %v943
  %945 = vmatmul.f32.gmra.mxu0 %v944
  %v946 = vpop.f32.mrf.mxu0
  %v947 = vadd.f32 %v907, %v946
  %v948 = vand.u32 %v61, 4294901760
  %v949 = vsub.f32 %v61, %v948
  %950 = vmatmul.f32.gmra.mxu0 %v949
  %v951 = vpop.f32.mrf.mxu0
  %v952 = vadd.f32 %v911, %v951
  %953 = vdwg.mxu0
  %954 = vmatpush.msra.mxu0 0.0
  %955 = vmatpush.msra.mxu0 0.0
  %956 = vmatpush.msra.mxu0 0.0
  %957 = vmatpush.msra.mxu0 0.0
  %958 = vmatpush.msra.mxu0 0.0
  %959 = vmatpush.msra.mxu0 0.0
  %960 = vmatpush.msra.mxu0 0.0
  %961 = vmatpush.msra.mxu0 0.0
  %962 = vmatpush.msra.mxu0 0.0
  %963 = vmatpush.msra.mxu0 0.0
  %964 = vmatpush.msra.mxu0 0.0
  %965 = vmatpush.msra.mxu0 0.0
  %966 = vmatpush.msra.mxu0 0.0
  %967 = vmatpush.msra.mxu0 0.0
  %v968 = vand.u32 %v25, 4294901760
  %969 = vmatpush.msra.mxu0 %v968
  %v970 = vand.u32 %v21, 4294901760
  %971 = vmatpush.msra.mxu0 %v970
  %v972 = vand.u32 %v52, 4294901760
  %v973 = vsub.f32 %v52, %v972
  %v974 = vand.u32 %v973, 4294901760
  %975 = vmatmul.f32.gmra.mxu0 %v974
  %v976 = vpop.f32.mrf.mxu0
  %v977 = vadd.f32 %v937, %v976
  %v978 = vand.u32 %v55, 4294901760
  %v979 = vsub.f32 %v55, %v978
  %v980 = vand.u32 %v979, 4294901760
  %981 = vmatmul.f32.gmra.mxu0 %v980
  %v982 = vpop.f32.mrf.mxu0
  %v983 = vadd.f32 %v942, %v982
  %v984 = vand.u32 %v58, 4294901760
  %v985 = vsub.f32 %v58, %v984
  %v986 = vand.u32 %v985, 4294901760
  %987 = vmatmul.f32.gmra.mxu0 %v986
  %v988 = vpop.f32.mrf.mxu0
  %v989 = vadd.f32 %v947, %v988
  %v990 = vand.u32 %v61, 4294901760
  %v991 = vsub.f32 %v61, %v990
  %v992 = vand.u32 %v991, 4294901760
  %993 = vmatmul.f32.gmra.mxu0 %v992
  %v994 = vpop.f32.mrf.mxu0
  %v995 = vadd.f32 %v952, %v994
  %996 = vdwg.mxu0
  %997 = vmatpush.msra.mxu0 0.0
  %998 = vmatpush.msra.mxu0 0.0
  %999 = vmatpush.msra.mxu0 0.0
  %1000 = vmatpush.msra.mxu0 0.0
  %1001 = vmatpush.msra.mxu0 0.0
  %1002 = vmatpush.msra.mxu0 0.0
  %1003 = vmatpush.msra.mxu0 0.0
  %1004 = vmatpush.msra.mxu0 0.0
  %1005 = vmatpush.msra.mxu0 0.0
  %1006 = vmatpush.msra.mxu0 0.0
  %1007 = vmatpush.msra.mxu0 0.0
  %1008 = vmatpush.msra.mxu0 0.0
  %1009 = vmatpush.msra.mxu0 0.0
  %1010 = vmatpush.msra.mxu0 0.0
  %v1011 = vand.u32 %v25, 4294901760
  %v1012 = vsub.f32 %v25, %v1011
  %v1013 = vand.u32 %v1012, 4294901760
  %1014 = vmatpush.msra.mxu0 %v1013
  %v1015 = vand.u32 %v21, 4294901760
  %v1016 = vsub.f32 %v21, %v1015
  %v1017 = vand.u32 %v1016, 4294901760
  %1018 = vmatpush.msra.mxu0 %v1017
  %v1019 = vand.u32 %v52, 4294901760
  %1020 = vmatmul.f32.gmra.mxu0 %v1019
  %v1021 = vpop.f32.mrf.mxu0
  %v1022 = vadd.f32 %v977, %v1021
  %v1023 = vand.u32 %v55, 4294901760
  %1024 = vmatmul.f32.gmra.mxu0 %v1023
  %v1025 = vpop.f32.mrf.mxu0
  %v1026 = vadd.f32 %v983, %v1025
  %v1027 = vand.u32 %v58, 4294901760
  %1028 = vmatmul.f32.gmra.mxu0 %v1027
  %v1029 = vpop.f32.mrf.mxu0
  %v1030 = vadd.f32 %v989, %v1029
  %v1031 = vand.u32 %v61, 4294901760
  %1032 = vmatmul.f32.gmra.mxu0 %v1031
  %v1033 = vpop.f32.mrf.mxu0
  %v1034 = vadd.f32 %v995, %v1033
  %1035 = vdwg.mxu0
  %1036 = vmatpush.msra.mxu0 0.0
  %1037 = vmatpush.msra.mxu0 0.0
  %1038 = vmatpush.msra.mxu0 0.0
  %1039 = vmatpush.msra.mxu0 0.0
  %1040 = vmatpush.msra.mxu0 0.0
  %1041 = vmatpush.msra.mxu0 0.0
  %1042 = vmatpush.msra.mxu0 0.0
  %1043 = vmatpush.msra.mxu0 0.0
  %1044 = vmatpush.msra.mxu0 0.0
  %1045 = vmatpush.msra.mxu0 0.0
  %1046 = vmatpush.msra.mxu0 0.0
  %1047 = vmatpush.msra.mxu0 0.0
  %1048 = vmatpush.msra.mxu0 0.0
  %1049 = vmatpush.msra.mxu0 0.0
  %v1050 = vand.u32 %v25, 4294901760
  %1051 = vmatpush.msra.mxu0 %v1050
  %v1052 = vand.u32 %v21, 4294901760
  %1053 = vmatpush.msra.mxu0 %v1052
  %v1054 = vand.u32 %v52, 4294901760
  %1055 = vmatmul.f32.gmra.mxu0 %v1054
  %v1056 = vpop.f32.mrf.mxu0
  %v1057 = vadd.f32 %v1022, %v1056
  %v1058 = vand.u32 %v55, 4294901760
  %1059 = vmatmul.f32.gmra.mxu0 %v1058
  %v1060 = vpop.f32.mrf.mxu0
  %v1061 = vadd.f32 %v1026, %v1060
  %v1062 = vand.u32 %v58, 4294901760
  %1063 = vmatmul.f32.gmra.mxu0 %v1062
  %v1064 = vpop.f32.mrf.mxu0
  %v1065 = vadd.f32 %v1030, %v1064
  %v1066 = vand.u32 %v61, 4294901760
  %1067 = vmatmul.f32.gmra.mxu0 %v1066
  %v1068 = vpop.f32.mrf.mxu0
  %v1069 = vadd.f32 %v1034, %v1068
  %1070 = vdwg.mxu0
  %1071 = vst [vmem:[%s3] sm:$0xff] %v301
  %1072 = vst [vmem:[%s3 + $0x8] sm:$0xff] %v553
  %1073 = vst [vmem:[%s3 + $0x10] sm:$0xff] %v805
  %1074 = vst [vmem:[%s3 + $0x18] sm:$0xff] %v1057
  %1075 = vst [vmem:[%s3 + $0x20] sm:$0xff] %v305
  %1076 = vst [vmem:[%s3 + $0x28] sm:$0xff] %v557
  %1077 = vst [vmem:[%s3 + $0x30] sm:$0xff] %v809
  %1078 = vst [vmem:[%s3 + $0x38] sm:$0xff] %v1061
  %1079 = vst [vmem:[%s3 + $0x40] sm:$0xff] %v309
  %1080 = vst [vmem:[%s3 + $0x48] sm:$0xff] %v561
  %1081 = vst [vmem:[%s3 + $0x50] sm:$0xff] %v813
  %1082 = vst [vmem:[%s3 + $0x58] sm:$0xff] %v1065
  %1083 = vst [vmem:[%s3 + $0x60] sm:$0xff] %v313
  %1084 = vst [vmem:[%s3 + $0x68] sm:$0xff] %v565
  %1085 = vst [vmem:[%s3 + $0x70] sm:$0xff] %v817
  %1086 = vst [vmem:[%s3 + $0x78] sm:$0xff] %v1069
  // Predicated region
  $region14: #{mc_dropout_transpose_conv.1} parent=0 // pred_check
    _
  $region15: #{mc_dropout_transpose_conv.1} parent=0 // pred_check_branch
    %1088 = sbr.rel (0) target = $region17
  $region16: #{mc_dropout_transpose_conv.1} parent=0 // pred_region
    _
  $region17: #{mc_dropout_transpose_conv.1} parent=0 // pred_fallthru
    _
  // Predicated region
  $region18: #{mc_dropout_transpose_conv.1} parent=0 // pred_check
    _
  $region19: #{mc_dropout_transpose_conv.1} parent=0 // pred_check_branch
    %1090 = sbr.rel (0) target = $region21
  $region20: #{mc_dropout_transpose_conv.1} parent=0 // pred_region
    _
  $region21: #{mc_dropout_transpose_conv.1} parent=0 // pred_fallthru
    _

</llo_original>
